<compile_context>
chip_gen: v6e
topology: v6e:2x2x1
jax: 0.10.0
libtpu: 0.0.40
codegen_flags: <defaults>
</compile_context>

<pallas_src>
import jax
import jax.numpy as jnp
from jax.experimental import pallas as pl
from jax.experimental.pallas import tpu as pltpu


# ----------------------------------------------------------------------------
# Pallas kernel: box conversion + conf*score, native (B, anchors, channels).
# ----------------------------------------------------------------------------
def _preprocess_kernel(x_ref, box_ref, score_ref):
    # x_ref: (B, tA, D) block, channels on the lane (minor) dim.
    cxy = x_ref[:, :, 0:2].astype(jnp.float32)            # (B, tA, 2) [cx, cy]
    half_wh = 0.5 * x_ref[:, :, 2:4].astype(jnp.float32)  # (B, tA, 2) [w/2, h/2]
    # box @ convert_matrix == [cx-0.5w, cy-0.5h, cx+0.5w, cy+0.5h]  (pure VPU,
    # exact -- no MXU precision loss).
    box_ref[...] = jnp.concatenate([cxy - half_wh, cxy + half_wh],
                                   axis=-1).astype(box_ref.dtype)
    conf = x_ref[:, :, 4:5].astype(jnp.float32)            # (B, tA, 1)
    cls_scores = x_ref[:, :, 5:].astype(jnp.float32)       # (B, tA, NC)
    score_ref[...] = (cls_scores * conf).astype(score_ref.dtype)


def _cdiv(a, b):
    return -(-a // b)


def _round_up(a, b):
    return _cdiv(a, b) * b


def _tensorcores_per_chip():
    # Heuristic: v7x ("TPU7x"/"TPU v7...") has 2 TensorCores per chip; v5e/v6e
    # have 1.  Default to 1 if detection fails.
    try:
        kind = getattr(jax.devices()[0], "device_kind", "") or ""
        if "7" in kind:
            return 2
    except Exception:
        pass
    return 1


def _choose_tiling(A, B, D, NC, itemsize):
    """Pick anchor tile / grid size: 1-2 (even on dual-TC chips) grid steps,
    VMEM budget as a backstop only."""
    pad128 = lambda n: _round_up(n, 128)
    # Per-anchor VMEM bytes for one set of in+out tiles, accounting for the
    # minor dim being lane-padded to 128 in VMEM.
    per_anchor = itemsize * B * (pad128(D) + pad128(4) + pad128(NC))
    budget = 8 << 20            # single-buffered per-step target (~16 MiB x2)
    min_steps = 2 if _tensorcores_per_chip() >= 2 else 1
    steps = min_steps
    while _cdiv(A, steps) * per_anchor > budget and steps < 64:
        steps += max(1, min_steps)   # keep step count even on dual-TC chips
    tile_a = max(8, _round_up(_cdiv(A, steps), 8))
    grid_a = _cdiv(A, tile_a)
    footprint = 2 * tile_a * per_anchor          # double-buffered in+out tiles
    return tile_a, grid_a, footprint


def preprocess(x):
    """x: (B, A, 5+NC) -> (nms_box (B,A,4), nms_score (B,A,NC)), same dtype."""
    B, A, D = x.shape
    NC = D - 5
    out_dtype = x.dtype
    itemsize = jnp.dtype(out_dtype).itemsize

    tile_a, grid_a, footprint = _choose_tiling(A, B, D, NC, itemsize)
    vmem_limit = int(min(48 << 20, max(16 << 20, footprint + (8 << 20))))

    cost = pl.CostEstimate(
        flops=int(B * A * (6 + NC)),
        transcendentals=0,
        bytes_accessed=int(itemsize * B * A * (D + 4 + NC)),
    )

    nms_box, nms_score = pl.pallas_call(
        _preprocess_kernel,
        out_shape=(jax.ShapeDtypeStruct((B, A, 4), out_dtype),
                   jax.ShapeDtypeStruct((B, A, NC), out_dtype)),
        grid_spec=pltpu.PrefetchScalarGridSpec(
            num_scalar_prefetch=0,
            grid=(grid_a,),
            in_specs=[pl.BlockSpec((B, tile_a, D), lambda a: (0, a, 0))],
            out_specs=[pl.BlockSpec((B, tile_a, 4), lambda a: (0, a, 0)),
                       pl.BlockSpec((B, tile_a, NC), lambda a: (0, a, 0))]),
        compiler_params=pltpu.CompilerParams(
            dimension_semantics=("parallel",),
            vmem_limit_bytes=vmem_limit),
        cost_estimate=cost,
    )(x)
    return nms_box, nms_score


# ----------------------------------------------------------------------------
# ORT_NMS stand-in + post-"NMS" glue (plain JAX, matches the PyTorch forward).
# ----------------------------------------------------------------------------
def ort_nms_indices(batch, num_boxes, num_det=16, key=None):
    # Deterministic stand-in for ORT_NMS.forward (reference uses random.randint
    # / torch.randint placeholders for ONNX tracing -- not reproducible).
    # Box indices start at 100 like the reference but are clamped in-range so
    # the downstream gathers never silently clamp out-of-bounds.
    # TODO(synk): real IoU-based NMS is not part of the reference forward math.
    key = jax.random.PRNGKey(1) if key is None else key
    batches = jnp.sort(jax.random.randint(key, (num_det,), 0, batch,
                                          dtype=jnp.int32))
    zeros = jnp.zeros((num_det,), dtype=jnp.int32)
    idxs = jnp.minimum(jnp.arange(100, 100 + num_det, dtype=jnp.int32),
                       num_boxes - 1)
    # selected_indices: (num_det, 3) columns = (batch, class, box)
    return jnp.stack([batches, zeros, idxs], axis=1)


def onnx_ort_forward(x, selected_indices):
    batch = x.shape[0]

    # --- Pallas hot path: box conversion + conf*score, single HBM pass -------
    nms_box, nms_score = preprocess(x)        # (B,A,4), (B,A,NC) native layout

    # --- post-"NMS" glue, matching the PyTorch forward exactly ---------------
    batch_inds = selected_indices[:, 0]
    cls_inds = selected_indices[:, 1]
    box_inds = selected_indices[:, 2]

    # Native-layout gathers (same values as reference nms_score[b, c, a] /
    # nms_box[b, a, :]).
    selected_score = nms_score[batch_inds, box_inds, cls_inds][:, None]  # (n,1)
    selected_box = nms_box[batch_inds, box_inds, :]                      # (n,4)
    dets = jnp.concatenate([selected_box, selected_score], axis=1)       # (n,5)

    n = dets.shape[0]
    batched_dets = jnp.broadcast_to(dets[None], (batch, n, 5))
    batch_template = jnp.arange(batch, dtype=batch_inds.dtype)
    mask = batch_inds[None, :] == batch_template[:, None]                # (B,n)
    batched_dets = jnp.where(mask[..., None], batched_dets,
                             jnp.zeros((), batched_dets.dtype))

    batched_labels = jnp.broadcast_to(cls_inds[None], (batch, n))
    batched_labels = jnp.where(mask, batched_labels,
                               -jnp.ones((), batched_labels.dtype))

    N = batched_dets.shape[0]
    batched_dets = jnp.concatenate(
        [batched_dets, jnp.zeros((N, 1, 5), batched_dets.dtype)], axis=1)
    batched_labels = jnp.concatenate(
        [batched_labels, -jnp.ones((N, 1), batched_labels.dtype)], axis=1)

    topk_inds = jnp.argsort(-batched_dets[:, :, -1], axis=1)             # desc
    batched_dets = jnp.take_along_axis(batched_dets, topk_inds[..., None],
                                       axis=1)
    det_classes = jnp.take_along_axis(batched_labels, topk_inds, axis=1)

    det_boxes = batched_dets[..., :4]
    det_scores = batched_dets[..., 4]
    num_det = (det_scores > 0).sum(axis=1, keepdims=True).astype(jnp.int32)
    return num_det, det_boxes, det_scores, det_classes


if __name__ == "__main__":
    B, A, NC = 2, 256, 3          # small shapes: (batch, anchors, 5+num_classes)
    D = 5 + NC

    key = jax.random.PRNGKey(0)
    kx, knms = jax.random.split(key)
    x = jax.random.uniform(kx, (B, A, D), dtype=jnp.float32)

    selected_indices = ort_nms_indices(B, A, num_det=16, key=knms)

    num_det, det_boxes, det_scores, det_classes = jax.jit(
        onnx_ort_forward)(x, selected_indices)
    jax.block_until_ready((num_det, det_boxes, det_scores, det_classes))

    # sanity: shapes must match the PyTorch module's outputs
    assert num_det.shape == (B, 1)
    assert det_boxes.shape == (B, 17, 4)
    assert det_scores.shape == (B, 17)
    assert det_classes.shape == (B, 17)

    # sanity: kernel math matches the reference formulas
    nms_box, nms_score = jax.jit(preprocess)(x)
    cx, cy, w, h = x[..., 0], x[..., 1], x[..., 2], x[..., 3]
    # box @ convert_matrix == stack([cx-0.5w, cy-0.5h, cx+0.5w, cy+0.5h], -1)
    ref_box = jnp.stack([cx - 0.5 * w, cy - 0.5 * h,
                         cx + 0.5 * w, cy + 0.5 * h], axis=-1)    # (B,A,4)
    ref_score = x[..., 5:] * x[..., 4:5]                          # (B,A,NC)
    assert jnp.allclose(nms_box, ref_box, atol=1e-5)
    assert jnp.allclose(nms_score, ref_score, atol=1e-5)

    print("KERNEL_OK")
</pallas_src>

<mosaic_0001>
module attributes {stable_mosaic.version = 11 : i64} {
  func.func @_preprocess_kernel(%arg0: i32, %arg1: memref<2x256x8xf32, #tpu.memory_space<vmem>>, %arg2: memref<2x256x4xf32, #tpu.memory_space<vmem>>, %arg3: memref<2x256x3xf32, #tpu.memory_space<vmem>>) attributes {dimension_semantics = [#tpu.dimension_semantics<parallel>], iteration_bounds = array<i64: 1>, scalar_prefetch = 0 : i64, scratch_operands = 0 : i64, tpu.core_type = #tpu.core_type<tc>, window_params = [{transform_indices = @transform_0, window_bounds = array<i64: 2, 256, 8>}, {transform_indices = @transform_1, window_bounds = array<i64: 2, 256, 4>}, {transform_indices = @transform_2, window_bounds = array<i64: 2, 256, 3>}]} {
    %c0 = arith.constant 0 : index
    %c0_0 = arith.constant 0 : index
    %c0_1 = arith.constant 0 : index
    %0 = vector.load %arg1[%c0, %c0_0, %c0_1] : memref<2x256x8xf32, #tpu.memory_space<vmem>>, vector<2x256x2xf32>
    %c0_2 = arith.constant 0 : index
    %c0_3 = arith.constant 0 : index
    %c2 = arith.constant 2 : index
    %1 = vector.load %arg1[%c0_2, %c0_3, %c2] : memref<2x256x8xf32, #tpu.memory_space<vmem>>, vector<2x256x2xf32>
    %cst = arith.constant 5.000000e-01 : f32
    %2 = vector.broadcast %cst : f32 to vector<2x256x2xf32>
    %3 = arith.mulf %2, %1 : vector<2x256x2xf32>
    %4 = arith.subf %0, %3 : vector<2x256x2xf32>
    %5 = arith.addf %0, %3 : vector<2x256x2xf32>
    %6 = tpu.concatenate %4, %5 in 2 : vector<2x256x2xf32>, vector<2x256x2xf32> -> vector<2x256x4xf32>
    %c0_4 = arith.constant 0 : index
    %c0_5 = arith.constant 0 : index
    %c0_6 = arith.constant 0 : index
    %7 = vector.load %arg2[%c0_4, %c0_5, %c0_6] : memref<2x256x4xf32, #tpu.memory_space<vmem>>, vector<2x256x4xf32>
    tpu.vector_store %arg2[%c0_4, %c0_5, %c0_6], %6 {strides = array<i32>} : memref<2x256x4xf32, #tpu.memory_space<vmem>>, vector<2x256x4xf32>,
    %c0_7 = arith.constant 0 : index
    %c0_8 = arith.constant 0 : index
    %c4 = arith.constant 4 : index
    %8 = vector.load %arg1[%c0_7, %c0_8, %c4] : memref<2x256x8xf32, #tpu.memory_space<vmem>>, vector<2x256x1xf32>
    %c0_9 = arith.constant 0 : index
    %c0_10 = arith.constant 0 : index
    %c5 = arith.constant 5 : index
    %9 = vector.load %arg1[%c0_9, %c0_10, %c5] : memref<2x256x8xf32, #tpu.memory_space<vmem>>, vector<2x256x3xf32>
    %10 = vector.broadcast %8 : vector<2x256x1xf32> to vector<2x256x3xf32>
    %11 = arith.mulf %9, %10 : vector<2x256x3xf32>
    %c0_11 = arith.constant 0 : index
    %c0_12 = arith.constant 0 : index
    %c0_13 = arith.constant 0 : index
    %12 = vector.load %arg3[%c0_11, %c0_12, %c0_13] : memref<2x256x3xf32, #tpu.memory_space<vmem>>, vector<2x256x3xf32>
    tpu.vector_store %arg3[%c0_11, %c0_12, %c0_13], %11 {strides = array<i32>} : memref<2x256x3xf32, #tpu.memory_space<vmem>>, vector<2x256x3xf32>,
    return
  }
  func.func @transform_0(%arg0: i32) -> (i32, i32, i32) {
    %c0_i32 = arith.constant 0 : i32
    %c0_i32_0 = arith.constant 0 : i32
    %c0_i32_1 = arith.constant 0 : i32
    return %c0_i32, %arg0, %c0_i32_0 : i32, i32, i32
  }
  func.func @transform_1(%arg0: i32) -> (i32, i32, i32) {
    %c0_i32 = arith.constant 0 : i32
    %c0_i32_0 = arith.constant 0 : i32
    %c0_i32_1 = arith.constant 0 : i32
    return %c0_i32, %arg0, %c0_i32_0 : i32, i32, i32
  }
  func.func @transform_2(%arg0: i32) -> (i32, i32, i32) {
    %c0_i32 = arith.constant 0 : i32
    %c0_i32_0 = arith.constant 0 : i32
    %c0_i32_1 = arith.constant 0 : i32
    return %c0_i32, %arg0, %c0_i32_0 : i32, i32, i32
  }
}

</mosaic_0001>

<llo_original>
// kernel: onnx_ort_forward.1
$region0: #{onnx_ort_forward.1}
  #allocation0 [shape = 'u32[]', space=smem, size = 0x4, offset = 0x4, fixed_abs, tag = 'smem constant byte address 0x4 - core index']
  #allocation1 [shape = 'u32[144,128]{1,0:T(1,128)}', space=vmem, size = 0x12000, scoped, tag = 'internal scratch']
  %s0 = inlined_call_operand.vmem [shape: f32[2,256,8], index: 0, kind: input, shape index: {}]
  %s1 = inlined_call_operand.vmem [shape: f32[2,256,4], index: 1, kind: output, shape index: {0}]
  %s2 = inlined_call_operand.vmem [shape: f32[2,256,3], index: 2, kind: output, shape index: {1}]
  %3 = xla_tuple %s1, %s2
  %s4 = sld [smem:[#allocation0]]
  $region22: #{onnx_ort_forward.1} parent=0
    _
  %s6 = ssub.s32 1, %s4
  %s7 = scalar_select 0, %s6, %s4
  // Predicated region
  $region2: #{onnx_ort_forward.1} parent=0 // pred_check
    _
  $region3: #{onnx_ort_forward.1} parent=0 // pred_check_branch
    %9 = sbr.rel (0) target = $region5
  $region4: #{onnx_ort_forward.1} parent=0 // pred_region
    _
  $region5: #{onnx_ort_forward.1} parent=0 // pred_fallthru
    _
  %v10 = vld [vmem:[%s0] sm:$0xff]
  %v11 = vld [vmem:[%s0 + $0x8] sm:$0xff]
  %v12 = vld [vmem:[%s0 + $0x10] sm:$0xff]
  %v13 = vld [vmem:[%s0 + $0x18] sm:$0xff]
  %v14 = vld [vmem:[%s0 + $0x20] sm:$0xff]
  %v15 = vld [vmem:[%s0 + $0x28] sm:$0xff]
  %v16 = vld [vmem:[%s0 + $0x30] sm:$0xff]
  %v17 = vld [vmem:[%s0 + $0x38] sm:$0xff]
  %v18 = vld [vmem:[%s0 + $0x40] sm:$0xff]
  %v19 = vld [vmem:[%s0 + $0x48] sm:$0xff]
  %v20 = vld [vmem:[%s0 + $0x50] sm:$0xff]
  %v21 = vld [vmem:[%s0 + $0x58] sm:$0xff]
  %v22 = vld [vmem:[%s0 + $0x60] sm:$0xff]
  %v23 = vld [vmem:[%s0 + $0x68] sm:$0xff]
  %v24 = vld [vmem:[%s0 + $0x70] sm:$0xff]
  %v25 = vld [vmem:[%s0 + $0x78] sm:$0xff]
  %v26 = vld [vmem:[%s0 + $0x80] sm:$0xff]
  %v27 = vld [vmem:[%s0 + $0x88] sm:$0xff]
  %v28 = vld [vmem:[%s0 + $0x90] sm:$0xff]
  %v29 = vld [vmem:[%s0 + $0x98] sm:$0xff]
  %v30 = vld [vmem:[%s0 + $0xa0] sm:$0xff]
  %v31 = vld [vmem:[%s0 + $0xa8] sm:$0xff]
  %v32 = vld [vmem:[%s0 + $0xb0] sm:$0xff]
  %v33 = vld [vmem:[%s0 + $0xb8] sm:$0xff]
  %v34 = vld [vmem:[%s0 + $0xc0] sm:$0xff]
  %v35 = vld [vmem:[%s0 + $0xc8] sm:$0xff]
  %v36 = vld [vmem:[%s0 + $0xd0] sm:$0xff]
  %v37 = vld [vmem:[%s0 + $0xd8] sm:$0xff]
  %v38 = vld [vmem:[%s0 + $0xe0] sm:$0xff]
  %v39 = vld [vmem:[%s0 + $0xe8] sm:$0xff]
  %v40 = vld [vmem:[%s0 + $0xf0] sm:$0xff]
  %v41 = vld [vmem:[%s0 + $0xf8] sm:$0xff]
  %v42 = vld [vmem:[%s0 + $0x100] sm:$0xff]
  %v43 = vld [vmem:[%s0 + $0x108] sm:$0xff]
  %v44 = vld [vmem:[%s0 + $0x110] sm:$0xff]
  %v45 = vld [vmem:[%s0 + $0x118] sm:$0xff]
  %v46 = vld [vmem:[%s0 + $0x120] sm:$0xff]
  %v47 = vld [vmem:[%s0 + $0x128] sm:$0xff]
  %v48 = vld [vmem:[%s0 + $0x130] sm:$0xff]
  %v49 = vld [vmem:[%s0 + $0x138] sm:$0xff]
  %v50 = vld [vmem:[%s0 + $0x140] sm:$0xff]
  %v51 = vld [vmem:[%s0 + $0x148] sm:$0xff]
  %v52 = vld [vmem:[%s0 + $0x150] sm:$0xff]
  %v53 = vld [vmem:[%s0 + $0x158] sm:$0xff]
  %v54 = vld [vmem:[%s0 + $0x160] sm:$0xff]
  %v55 = vld [vmem:[%s0 + $0x168] sm:$0xff]
  %v56 = vld [vmem:[%s0 + $0x170] sm:$0xff]
  %v57 = vld [vmem:[%s0 + $0x178] sm:$0xff]
  %v58 = vld [vmem:[%s0 + $0x180] sm:$0xff]
  %v59 = vld [vmem:[%s0 + $0x188] sm:$0xff]
  %v60 = vld [vmem:[%s0 + $0x190] sm:$0xff]
  %v61 = vld [vmem:[%s0 + $0x198] sm:$0xff]
  %v62 = vld [vmem:[%s0 + $0x1a0] sm:$0xff]
  %v63 = vld [vmem:[%s0 + $0x1a8] sm:$0xff]
  %v64 = vld [vmem:[%s0 + $0x1b0] sm:$0xff]
  %v65 = vld [vmem:[%s0 + $0x1b8] sm:$0xff]
  %v66 = vld [vmem:[%s0 + $0x1c0] sm:$0xff]
  %v67 = vld [vmem:[%s0 + $0x1c8] sm:$0xff]
  %v68 = vld [vmem:[%s0 + $0x1d0] sm:$0xff]
  %v69 = vld [vmem:[%s0 + $0x1d8] sm:$0xff]
  %v70 = vld [vmem:[%s0 + $0x1e0] sm:$0xff]
  %v71 = vld [vmem:[%s0 + $0x1e8] sm:$0xff]
  %v72 = vld [vmem:[%s0 + $0x1f0] sm:$0xff]
  %v73 = vld [vmem:[%s0 + $0x1f8] sm:$0xff]
  %v74 = vmul.f32 %v10, 0.5
  %v75 = vmul.f32 %v11, 0.5
  %v76 = vmul.f32 %v12, 0.5
  %v77 = vmul.f32 %v13, 0.5
  %v78 = vmul.f32 %v14, 0.5
  %v79 = vmul.f32 %v15, 0.5
  %v80 = vmul.f32 %v16, 0.5
  %v81 = vmul.f32 %v17, 0.5
  %v82 = vmul.f32 %v18, 0.5
  %v83 = vmul.f32 %v19, 0.5
  %v84 = vmul.f32 %v20, 0.5
  %v85 = vmul.f32 %v21, 0.5
  %v86 = vmul.f32 %v22, 0.5
  %v87 = vmul.f32 %v23, 0.5
  %v88 = vmul.f32 %v24, 0.5
  %v89 = vmul.f32 %v25, 0.5
  %v90 = vmul.f32 %v26, 0.5
  %v91 = vmul.f32 %v27, 0.5
  %v92 = vmul.f32 %v28, 0.5
  %v93 = vmul.f32 %v29, 0.5
  %v94 = vmul.f32 %v30, 0.5
  %v95 = vmul.f32 %v31, 0.5
  %v96 = vmul.f32 %v32, 0.5
  %v97 = vmul.f32 %v33, 0.5
  %v98 = vmul.f32 %v34, 0.5
  %v99 = vmul.f32 %v35, 0.5
  %v100 = vmul.f32 %v36, 0.5
  %v101 = vmul.f32 %v37, 0.5
  %v102 = vmul.f32 %v38, 0.5
  %v103 = vmul.f32 %v39, 0.5
  %v104 = vmul.f32 %v40, 0.5
  %v105 = vmul.f32 %v41, 0.5
  %v106 = vmul.f32 %v42, 0.5
  %v107 = vmul.f32 %v43, 0.5
  %v108 = vmul.f32 %v44, 0.5
  %v109 = vmul.f32 %v45, 0.5
  %v110 = vmul.f32 %v46, 0.5
  %v111 = vmul.f32 %v47, 0.5
  %v112 = vmul.f32 %v48, 0.5
  %v113 = vmul.f32 %v49, 0.5
  %v114 = vmul.f32 %v50, 0.5
  %v115 = vmul.f32 %v51, 0.5
  %v116 = vmul.f32 %v52, 0.5
  %v117 = vmul.f32 %v53, 0.5
  %v118 = vmul.f32 %v54, 0.5
  %v119 = vmul.f32 %v55, 0.5
  %v120 = vmul.f32 %v56, 0.5
  %v121 = vmul.f32 %v57, 0.5
  %v122 = vmul.f32 %v58, 0.5
  %v123 = vmul.f32 %v59, 0.5
  %v124 = vmul.f32 %v60, 0.5
  %v125 = vmul.f32 %v61, 0.5
  %v126 = vmul.f32 %v62, 0.5
  %v127 = vmul.f32 %v63, 0.5
  %v128 = vmul.f32 %v64, 0.5
  %v129 = vmul.f32 %v65, 0.5
  %v130 = vmul.f32 %v66, 0.5
  %v131 = vmul.f32 %v67, 0.5
  %v132 = vmul.f32 %v68, 0.5
  %v133 = vmul.f32 %v69, 0.5
  %v134 = vmul.f32 %v70, 0.5
  %v135 = vmul.f32 %v71, 0.5
  %v136 = vmul.f32 %v72, 0.5
  %v137 = vmul.f32 %v73, 0.5
  %202 = vrot.lane.b32.xlu0 %v74, 126
  %v203 = vpop.permute.xlu0 %202
  %204 = vrot.lane.b32.xlu0 %v75, 126
  %v205 = vpop.permute.xlu0 %204
  %206 = vrot.lane.b32.xlu0 %v76, 126
  %v207 = vpop.permute.xlu0 %206
  %208 = vrot.lane.b32.xlu0 %v77, 126
  %v209 = vpop.permute.xlu0 %208
  %210 = vrot.lane.b32.xlu0 %v78, 126
  %v211 = vpop.permute.xlu0 %210
  %212 = vrot.lane.b32.xlu0 %v79, 126
  %v213 = vpop.permute.xlu0 %212
  %214 = vrot.lane.b32.xlu0 %v80, 126
  %v215 = vpop.permute.xlu0 %214
  %216 = vrot.lane.b32.xlu0 %v81, 126
  %v217 = vpop.permute.xlu0 %216
  %218 = vrot.lane.b32.xlu0 %v82, 126
  %v219 = vpop.permute.xlu0 %218
  %220 = vrot.lane.b32.xlu0 %v83, 126
  %v221 = vpop.permute.xlu0 %220
  %222 = vrot.lane.b32.xlu0 %v84, 126
  %v223 = vpop.permute.xlu0 %222
  %224 = vrot.lane.b32.xlu0 %v85, 126
  %v225 = vpop.permute.xlu0 %224
  %226 = vrot.lane.b32.xlu0 %v86, 126
  %v227 = vpop.permute.xlu0 %226
  %228 = vrot.lane.b32.xlu0 %v87, 126
  %v229 = vpop.permute.xlu0 %228
  %230 = vrot.lane.b32.xlu0 %v88, 126
  %v231 = vpop.permute.xlu0 %230
  %232 = vrot.lane.b32.xlu0 %v89, 126
  %v233 = vpop.permute.xlu0 %232
  %234 = vrot.lane.b32.xlu0 %v90, 126
  %v235 = vpop.permute.xlu0 %234
  %236 = vrot.lane.b32.xlu0 %v91, 126
  %v237 = vpop.permute.xlu0 %236
  %238 = vrot.lane.b32.xlu0 %v92, 126
  %v239 = vpop.permute.xlu0 %238
  %240 = vrot.lane.b32.xlu0 %v93, 126
  %v241 = vpop.permute.xlu0 %240
  %242 = vrot.lane.b32.xlu0 %v94, 126
  %v243 = vpop.permute.xlu0 %242
  %244 = vrot.lane.b32.xlu0 %v95, 126
  %v245 = vpop.permute.xlu0 %244
  %246 = vrot.lane.b32.xlu0 %v96, 126
  %v247 = vpop.permute.xlu0 %246
  %248 = vrot.lane.b32.xlu0 %v97, 126
  %v249 = vpop.permute.xlu0 %248
  %250 = vrot.lane.b32.xlu0 %v98, 126
  %v251 = vpop.permute.xlu0 %250
  %252 = vrot.lane.b32.xlu0 %v99, 126
  %v253 = vpop.permute.xlu0 %252
  %254 = vrot.lane.b32.xlu0 %v100, 126
  %v255 = vpop.permute.xlu0 %254
  %256 = vrot.lane.b32.xlu0 %v101, 126
  %v257 = vpop.permute.xlu0 %256
  %258 = vrot.lane.b32.xlu0 %v102, 126
  %v259 = vpop.permute.xlu0 %258
  %260 = vrot.lane.b32.xlu0 %v103, 126
  %v261 = vpop.permute.xlu0 %260
  %262 = vrot.lane.b32.xlu0 %v104, 126
  %v263 = vpop.permute.xlu0 %262
  %264 = vrot.lane.b32.xlu0 %v105, 126
  %v265 = vpop.permute.xlu0 %264
  %266 = vrot.lane.b32.xlu0 %v106, 126
  %v267 = vpop.permute.xlu0 %266
  %268 = vrot.lane.b32.xlu0 %v107, 126
  %v269 = vpop.permute.xlu0 %268
  %270 = vrot.lane.b32.xlu0 %v108, 126
  %v271 = vpop.permute.xlu0 %270
  %272 = vrot.lane.b32.xlu0 %v109, 126
  %v273 = vpop.permute.xlu0 %272
  %274 = vrot.lane.b32.xlu0 %v110, 126
  %v275 = vpop.permute.xlu0 %274
  %276 = vrot.lane.b32.xlu0 %v111, 126
  %v277 = vpop.permute.xlu0 %276
  %278 = vrot.lane.b32.xlu0 %v112, 126
  %v279 = vpop.permute.xlu0 %278
  %280 = vrot.lane.b32.xlu0 %v113, 126
  %v281 = vpop.permute.xlu0 %280
  %282 = vrot.lane.b32.xlu0 %v114, 126
  %v283 = vpop.permute.xlu0 %282
  %284 = vrot.lane.b32.xlu0 %v115, 126
  %v285 = vpop.permute.xlu0 %284
  %286 = vrot.lane.b32.xlu0 %v116, 126
  %v287 = vpop.permute.xlu0 %286
  %288 = vrot.lane.b32.xlu0 %v117, 126
  %v289 = vpop.permute.xlu0 %288
  %290 = vrot.lane.b32.xlu0 %v118, 126
  %v291 = vpop.permute.xlu0 %290
  %292 = vrot.lane.b32.xlu0 %v119, 126
  %v293 = vpop.permute.xlu0 %292
  %294 = vrot.lane.b32.xlu0 %v120, 126
  %v295 = vpop.permute.xlu0 %294
  %296 = vrot.lane.b32.xlu0 %v121, 126
  %v297 = vpop.permute.xlu0 %296
  %298 = vrot.lane.b32.xlu0 %v122, 126
  %v299 = vpop.permute.xlu0 %298
  %300 = vrot.lane.b32.xlu0 %v123, 126
  %v301 = vpop.permute.xlu0 %300
  %302 = vrot.lane.b32.xlu0 %v124, 126
  %v303 = vpop.permute.xlu0 %302
  %304 = vrot.lane.b32.xlu0 %v125, 126
  %v305 = vpop.permute.xlu0 %304
  %306 = vrot.lane.b32.xlu0 %v126, 126
  %v307 = vpop.permute.xlu0 %306
  %308 = vrot.lane.b32.xlu0 %v127, 126
  %v309 = vpop.permute.xlu0 %308
  %310 = vrot.lane.b32.xlu0 %v128, 126
  %v311 = vpop.permute.xlu0 %310
  %312 = vrot.lane.b32.xlu0 %v129, 126
  %v313 = vpop.permute.xlu0 %312
  %314 = vrot.lane.b32.xlu0 %v130, 126
  %v315 = vpop.permute.xlu0 %314
  %316 = vrot.lane.b32.xlu0 %v131, 126
  %v317 = vpop.permute.xlu0 %316
  %318 = vrot.lane.b32.xlu0 %v132, 126
  %v319 = vpop.permute.xlu0 %318
  %320 = vrot.lane.b32.xlu0 %v133, 126
  %v321 = vpop.permute.xlu0 %320
  %322 = vrot.lane.b32.xlu0 %v134, 126
  %v323 = vpop.permute.xlu0 %322
  %324 = vrot.lane.b32.xlu0 %v135, 126
  %v325 = vpop.permute.xlu0 %324
  %326 = vrot.lane.b32.xlu0 %v136, 126
  %v327 = vpop.permute.xlu0 %326
  %328 = vrot.lane.b32.xlu0 %v137, 126
  %v329 = vpop.permute.xlu0 %328
  %v394 = vsub.f32 %v10, %v203
  %v395 = vsub.f32 %v11, %v205
  %v396 = vsub.f32 %v12, %v207
  %v397 = vsub.f32 %v13, %v209
  %v398 = vsub.f32 %v14, %v211
  %v399 = vsub.f32 %v15, %v213
  %v400 = vsub.f32 %v16, %v215
  %v401 = vsub.f32 %v17, %v217
  %v402 = vsub.f32 %v18, %v219
  %v403 = vsub.f32 %v19, %v221
  %v404 = vsub.f32 %v20, %v223
  %v405 = vsub.f32 %v21, %v225
  %v406 = vsub.f32 %v22, %v227
  %v407 = vsub.f32 %v23, %v229
  %v408 = vsub.f32 %v24, %v231
  %v409 = vsub.f32 %v25, %v233
  %v410 = vsub.f32 %v26, %v235
  %v411 = vsub.f32 %v27, %v237
  %v412 = vsub.f32 %v28, %v239
  %v413 = vsub.f32 %v29, %v241
  %v414 = vsub.f32 %v30, %v243
  %v415 = vsub.f32 %v31, %v245
  %v416 = vsub.f32 %v32, %v247
  %v417 = vsub.f32 %v33, %v249
  %v418 = vsub.f32 %v34, %v251
  %v419 = vsub.f32 %v35, %v253
  %v420 = vsub.f32 %v36, %v255
  %v421 = vsub.f32 %v37, %v257
  %v422 = vsub.f32 %v38, %v259
  %v423 = vsub.f32 %v39, %v261
  %v424 = vsub.f32 %v40, %v263
  %v425 = vsub.f32 %v41, %v265
  %v426 = vsub.f32 %v42, %v267
  %v427 = vsub.f32 %v43, %v269
  %v428 = vsub.f32 %v44, %v271
  %v429 = vsub.f32 %v45, %v273
  %v430 = vsub.f32 %v46, %v275
  %v431 = vsub.f32 %v47, %v277
  %v432 = vsub.f32 %v48, %v279
  %v433 = vsub.f32 %v49, %v281
  %v434 = vsub.f32 %v50, %v283
  %v435 = vsub.f32 %v51, %v285
  %v436 = vsub.f32 %v52, %v287
  %v437 = vsub.f32 %v53, %v289
  %v438 = vsub.f32 %v54, %v291
  %v439 = vsub.f32 %v55, %v293
  %v440 = vsub.f32 %v56, %v295
  %v441 = vsub.f32 %v57, %v297
  %v442 = vsub.f32 %v58, %v299
  %v443 = vsub.f32 %v59, %v301
  %v444 = vsub.f32 %v60, %v303
  %v445 = vsub.f32 %v61, %v305
  %v446 = vsub.f32 %v62, %v307
  %v447 = vsub.f32 %v63, %v309
  %v448 = vsub.f32 %v64, %v311
  %v449 = vsub.f32 %v65, %v313
  %v450 = vsub.f32 %v66, %v315
  %v451 = vsub.f32 %v67, %v317
  %v452 = vsub.f32 %v68, %v319
  %v453 = vsub.f32 %v69, %v321
  %v454 = vsub.f32 %v70, %v323
  %v455 = vsub.f32 %v71, %v325
  %v456 = vsub.f32 %v72, %v327
  %v457 = vsub.f32 %v73, %v329
  %v458 = vadd.f32 %v10, %v203
  %v459 = vadd.f32 %v11, %v205
  %v460 = vadd.f32 %v12, %v207
  %v461 = vadd.f32 %v13, %v209
  %v462 = vadd.f32 %v14, %v211
  %v463 = vadd.f32 %v15, %v213
  %v464 = vadd.f32 %v16, %v215
  %v465 = vadd.f32 %v17, %v217
  %v466 = vadd.f32 %v18, %v219
  %v467 = vadd.f32 %v19, %v221
  %v468 = vadd.f32 %v20, %v223
  %v469 = vadd.f32 %v21, %v225
  %v470 = vadd.f32 %v22, %v227
  %v471 = vadd.f32 %v23, %v229
  %v472 = vadd.f32 %v24, %v231
  %v473 = vadd.f32 %v25, %v233
  %v474 = vadd.f32 %v26, %v235
  %v475 = vadd.f32 %v27, %v237
  %v476 = vadd.f32 %v28, %v239
  %v477 = vadd.f32 %v29, %v241
  %v478 = vadd.f32 %v30, %v243
  %v479 = vadd.f32 %v31, %v245
  %v480 = vadd.f32 %v32, %v247
  %v481 = vadd.f32 %v33, %v249
  %v482 = vadd.f32 %v34, %v251
  %v483 = vadd.f32 %v35, %v253
  %v484 = vadd.f32 %v36, %v255
  %v485 = vadd.f32 %v37, %v257
  %v486 = vadd.f32 %v38, %v259
  %v487 = vadd.f32 %v39, %v261
  %v488 = vadd.f32 %v40, %v263
  %v489 = vadd.f32 %v41, %v265
  %v490 = vadd.f32 %v42, %v267
  %v491 = vadd.f32 %v43, %v269
  %v492 = vadd.f32 %v44, %v271
  %v493 = vadd.f32 %v45, %v273
  %v494 = vadd.f32 %v46, %v275
  %v495 = vadd.f32 %v47, %v277
  %v496 = vadd.f32 %v48, %v279
  %v497 = vadd.f32 %v49, %v281
  %v498 = vadd.f32 %v50, %v283
  %v499 = vadd.f32 %v51, %v285
  %v500 = vadd.f32 %v52, %v287
  %v501 = vadd.f32 %v53, %v289
  %v502 = vadd.f32 %v54, %v291
  %v503 = vadd.f32 %v55, %v293
  %v504 = vadd.f32 %v56, %v295
  %v505 = vadd.f32 %v57, %v297
  %v506 = vadd.f32 %v58, %v299
  %v507 = vadd.f32 %v59, %v301
  %v508 = vadd.f32 %v60, %v303
  %v509 = vadd.f32 %v61, %v305
  %v510 = vadd.f32 %v62, %v307
  %v511 = vadd.f32 %v63, %v309
  %v512 = vadd.f32 %v64, %v311
  %v513 = vadd.f32 %v65, %v313
  %v514 = vadd.f32 %v66, %v315
  %v515 = vadd.f32 %v67, %v317
  %v516 = vadd.f32 %v68, %v319
  %v517 = vadd.f32 %v69, %v321
  %v518 = vadd.f32 %v70, %v323
  %v519 = vadd.f32 %v71, %v325
  %v520 = vadd.f32 %v72, %v327
  %v521 = vadd.f32 %v73, %v329
  %586 = vrot.lane.b32.xlu0 %v458, 2
  %v587 = vpop.permute.xlu0 %586
  %588 = vrot.lane.b32.xlu0 %v459, 2
  %v589 = vpop.permute.xlu0 %588
  %590 = vrot.lane.b32.xlu0 %v460, 2
  %v591 = vpop.permute.xlu0 %590
  %592 = vrot.lane.b32.xlu0 %v461, 2
  %v593 = vpop.permute.xlu0 %592
  %594 = vrot.lane.b32.xlu0 %v462, 2
  %v595 = vpop.permute.xlu0 %594
  %596 = vrot.lane.b32.xlu0 %v463, 2
  %v597 = vpop.permute.xlu0 %596
  %598 = vrot.lane.b32.xlu0 %v464, 2
  %v599 = vpop.permute.xlu0 %598
  %600 = vrot.lane.b32.xlu0 %v465, 2
  %v601 = vpop.permute.xlu0 %600
  %602 = vrot.lane.b32.xlu0 %v466, 2
  %v603 = vpop.permute.xlu0 %602
  %604 = vrot.lane.b32.xlu0 %v467, 2
  %v605 = vpop.permute.xlu0 %604
  %606 = vrot.lane.b32.xlu0 %v468, 2
  %v607 = vpop.permute.xlu0 %606
  %608 = vrot.lane.b32.xlu0 %v469, 2
  %v609 = vpop.permute.xlu0 %608
  %610 = vrot.lane.b32.xlu0 %v470, 2
  %v611 = vpop.permute.xlu0 %610
  %612 = vrot.lane.b32.xlu0 %v471, 2
  %v613 = vpop.permute.xlu0 %612
  %614 = vrot.lane.b32.xlu0 %v472, 2
  %v615 = vpop.permute.xlu0 %614
  %616 = vrot.lane.b32.xlu0 %v473, 2
  %v617 = vpop.permute.xlu0 %616
  %618 = vrot.lane.b32.xlu0 %v474, 2
  %v619 = vpop.permute.xlu0 %618
  %620 = vrot.lane.b32.xlu0 %v475, 2
  %v621 = vpop.permute.xlu0 %620
  %622 = vrot.lane.b32.xlu0 %v476, 2
  %v623 = vpop.permute.xlu0 %622
  %624 = vrot.lane.b32.xlu0 %v477, 2
  %v625 = vpop.permute.xlu0 %624
  %626 = vrot.lane.b32.xlu0 %v478, 2
  %v627 = vpop.permute.xlu0 %626
  %628 = vrot.lane.b32.xlu0 %v479, 2
  %v629 = vpop.permute.xlu0 %628
  %630 = vrot.lane.b32.xlu0 %v480, 2
  %v631 = vpop.permute.xlu0 %630
  %632 = vrot.lane.b32.xlu0 %v481, 2
  %v633 = vpop.permute.xlu0 %632
  %634 = vrot.lane.b32.xlu0 %v482, 2
  %v635 = vpop.permute.xlu0 %634
  %636 = vrot.lane.b32.xlu0 %v483, 2
  %v637 = vpop.permute.xlu0 %636
  %638 = vrot.lane.b32.xlu0 %v484, 2
  %v639 = vpop.permute.xlu0 %638
  %640 = vrot.lane.b32.xlu0 %v485, 2
  %v641 = vpop.permute.xlu0 %640
  %642 = vrot.lane.b32.xlu0 %v486, 2
  %v643 = vpop.permute.xlu0 %642
  %644 = vrot.lane.b32.xlu0 %v487, 2
  %v645 = vpop.permute.xlu0 %644
  %646 = vrot.lane.b32.xlu0 %v488, 2
  %v647 = vpop.permute.xlu0 %646
  %648 = vrot.lane.b32.xlu0 %v489, 2
  %v649 = vpop.permute.xlu0 %648
  %650 = vrot.lane.b32.xlu0 %v490, 2
  %v651 = vpop.permute.xlu0 %650
  %652 = vrot.lane.b32.xlu0 %v491, 2
  %v653 = vpop.permute.xlu0 %652
  %654 = vrot.lane.b32.xlu0 %v492, 2
  %v655 = vpop.permute.xlu0 %654
  %656 = vrot.lane.b32.xlu0 %v493, 2
  %v657 = vpop.permute.xlu0 %656
  %658 = vrot.lane.b32.xlu0 %v494, 2
  %v659 = vpop.permute.xlu0 %658
  %660 = vrot.lane.b32.xlu0 %v495, 2
  %v661 = vpop.permute.xlu0 %660
  %662 = vrot.lane.b32.xlu0 %v496, 2
  %v663 = vpop.permute.xlu0 %662
  %664 = vrot.lane.b32.xlu0 %v497, 2
  %v665 = vpop.permute.xlu0 %664
  %666 = vrot.lane.b32.xlu0 %v498, 2
  %v667 = vpop.permute.xlu0 %666
  %668 = vrot.lane.b32.xlu0 %v499, 2
  %v669 = vpop.permute.xlu0 %668
  %670 = vrot.lane.b32.xlu0 %v500, 2
  %v671 = vpop.permute.xlu0 %670
  %672 = vrot.lane.b32.xlu0 %v501, 2
  %v673 = vpop.permute.xlu0 %672
  %674 = vrot.lane.b32.xlu0 %v502, 2
  %v675 = vpop.permute.xlu0 %674
  %676 = vrot.lane.b32.xlu0 %v503, 2
  %v677 = vpop.permute.xlu0 %676
  %678 = vrot.lane.b32.xlu0 %v504, 2
  %v679 = vpop.permute.xlu0 %678
  %680 = vrot.lane.b32.xlu0 %v505, 2
  %v681 = vpop.permute.xlu0 %680
  %682 = vrot.lane.b32.xlu0 %v506, 2
  %v683 = vpop.permute.xlu0 %682
  %684 = vrot.lane.b32.xlu0 %v507, 2
  %v685 = vpop.permute.xlu0 %684
  %686 = vrot.lane.b32.xlu0 %v508, 2
  %v687 = vpop.permute.xlu0 %686
  %688 = vrot.lane.b32.xlu0 %v509, 2
  %v689 = vpop.permute.xlu0 %688
  %690 = vrot.lane.b32.xlu0 %v510, 2
  %v691 = vpop.permute.xlu0 %690
  %692 = vrot.lane.b32.xlu0 %v511, 2
  %v693 = vpop.permute.xlu0 %692
  %694 = vrot.lane.b32.xlu0 %v512, 2
  %v695 = vpop.permute.xlu0 %694
  %696 = vrot.lane.b32.xlu0 %v513, 2
  %v697 = vpop.permute.xlu0 %696
  %698 = vrot.lane.b32.xlu0 %v514, 2
  %v699 = vpop.permute.xlu0 %698
  %700 = vrot.lane.b32.xlu0 %v515, 2
  %v701 = vpop.permute.xlu0 %700
  %702 = vrot.lane.b32.xlu0 %v516, 2
  %v703 = vpop.permute.xlu0 %702
  %704 = vrot.lane.b32.xlu0 %v517, 2
  %v705 = vpop.permute.xlu0 %704
  %706 = vrot.lane.b32.xlu0 %v518, 2
  %v707 = vpop.permute.xlu0 %706
  %708 = vrot.lane.b32.xlu0 %v519, 2
  %v709 = vpop.permute.xlu0 %708
  %710 = vrot.lane.b32.xlu0 %v520, 2
  %v711 = vpop.permute.xlu0 %710
  %712 = vrot.lane.b32.xlu0 %v521, 2
  %v713 = vpop.permute.xlu0 %712
  %vm778 = vcmask 15360
  %v779 = vsel %vm778, %v394, %v587
  %v780 = vsel %vm778, %v395, %v589
  %v781 = vsel %vm778, %v396, %v591
  %v782 = vsel %vm778, %v397, %v593
  %v783 = vsel %vm778, %v398, %v595
  %v784 = vsel %vm778, %v399, %v597
  %v785 = vsel %vm778, %v400, %v599
  %v786 = vsel %vm778, %v401, %v601
  %v787 = vsel %vm778, %v402, %v603
  %v788 = vsel %vm778, %v403, %v605
  %v789 = vsel %vm778, %v404, %v607
  %v790 = vsel %vm778, %v405, %v609
  %v791 = vsel %vm778, %v406, %v611
  %v792 = vsel %vm778, %v407, %v613
  %v793 = vsel %vm778, %v408, %v615
  %v794 = vsel %vm778, %v409, %v617
  %v795 = vsel %vm778, %v410, %v619
  %v796 = vsel %vm778, %v411, %v621
  %v797 = vsel %vm778, %v412, %v623
  %v798 = vsel %vm778, %v413, %v625
  %v799 = vsel %vm778, %v414, %v627
  %v800 = vsel %vm778, %v415, %v629
  %v801 = vsel %vm778, %v416, %v631
  %v802 = vsel %vm778, %v417, %v633
  %v803 = vsel %vm778, %v418, %v635
  %v804 = vsel %vm778, %v419, %v637
  %v805 = vsel %vm778, %v420, %v639
  %v806 = vsel %vm778, %v421, %v641
  %v807 = vsel %vm778, %v422, %v643
  %v808 = vsel %vm778, %v423, %v645
  %v809 = vsel %vm778, %v424, %v647
  %v810 = vsel %vm778, %v425, %v649
  %v811 = vsel %vm778, %v426, %v651
  %v812 = vsel %vm778, %v427, %v653
  %v813 = vsel %vm778, %v428, %v655
  %v814 = vsel %vm778, %v429, %v657
  %v815 = vsel %vm778, %v430, %v659
  %v816 = vsel %vm778, %v431, %v661
  %v817 = vsel %vm778, %v432, %v663
  %v818 = vsel %vm778, %v433, %v665
  %v819 = vsel %vm778, %v434, %v667
  %v820 = vsel %vm778, %v435, %v669
  %v821 = vsel %vm778, %v436, %v671
  %v822 = vsel %vm778, %v437, %v673
  %v823 = vsel %vm778, %v438, %v675
  %v824 = vsel %vm778, %v439, %v677
  %v825 = vsel %vm778, %v440, %v679
  %v826 = vsel %vm778, %v441, %v681
  %v827 = vsel %vm778, %v442, %v683
  %v828 = vsel %vm778, %v443, %v685
  %v829 = vsel %vm778, %v444, %v687
  %v830 = vsel %vm778, %v445, %v689
  %v831 = vsel %vm778, %v446, %v691
  %v832 = vsel %vm778, %v447, %v693
  %v833 = vsel %vm778, %v448, %v695
  %v834 = vsel %vm778, %v449, %v697
  %v835 = vsel %vm778, %v450, %v699
  %v836 = vsel %vm778, %v451, %v701
  %v837 = vsel %vm778, %v452, %v703
  %v838 = vsel %vm778, %v453, %v705
  %v839 = vsel %vm778, %v454, %v707
  %v840 = vsel %vm778, %v455, %v709
  %v841 = vsel %vm778, %v456, %v711
  %v842 = vsel %vm778, %v457, %v713
  %vm843 = vcmask 31744
  %844 = vst.msk [vmem:[%s1] sm:$0xff] %vm843, %v779
  %845 = vst.msk [vmem:[%s1 + $0x8] sm:$0xff] %vm843, %v780
  %846 = vst.msk [vmem:[%s1 + $0x10] sm:$0xff] %vm843, %v781
  %847 = vst.msk [vmem:[%s1 + $0x18] sm:$0xff] %vm843, %v782
  %848 = vst.msk [vmem:[%s1 + $0x20] sm:$0xff] %vm843, %v783
  %849 = vst.msk [vmem:[%s1 + $0x28] sm:$0xff] %vm843, %v784
  %850 = vst.msk [vmem:[%s1 + $0x30] sm:$0xff] %vm843, %v785
  %851 = vst.msk [vmem:[%s1 + $0x38] sm:$0xff] %vm843, %v786
  %852 = vst.msk [vmem:[%s1 + $0x40] sm:$0xff] %vm843, %v787
  %853 = vst.msk [vmem:[%s1 + $0x48] sm:$0xff] %vm843, %v788
  %854 = vst.msk [vmem:[%s1 + $0x50] sm:$0xff] %vm843, %v789
  %855 = vst.msk [vmem:[%s1 + $0x58] sm:$0xff] %vm843, %v790
  %856 = vst.msk [vmem:[%s1 + $0x60] sm:$0xff] %vm843, %v791
  %857 = vst.msk [vmem:[%s1 + $0x68] sm:$0xff] %vm843, %v792
  %858 = vst.msk [vmem:[%s1 + $0x70] sm:$0xff] %vm843, %v793
  %859 = vst.msk [vmem:[%s1 + $0x78] sm:$0xff] %vm843, %v794
  %860 = vst.msk [vmem:[%s1 + $0x80] sm:$0xff] %vm843, %v795
  %861 = vst.msk [vmem:[%s1 + $0x88] sm:$0xff] %vm843, %v796
  %862 = vst.msk [vmem:[%s1 + $0x90] sm:$0xff] %vm843, %v797
  %863 = vst.msk [vmem:[%s1 + $0x98] sm:$0xff] %vm843, %v798
  %864 = vst.msk [vmem:[%s1 + $0xa0] sm:$0xff] %vm843, %v799
  %865 = vst.msk [vmem:[%s1 + $0xa8] sm:$0xff] %vm843, %v800
  %866 = vst.msk [vmem:[%s1 + $0xb0] sm:$0xff] %vm843, %v801
  %867 = vst.msk [vmem:[%s1 + $0xb8] sm:$0xff] %vm843, %v802
  %868 = vst.msk [vmem:[%s1 + $0xc0] sm:$0xff] %vm843, %v803
  %869 = vst.msk [vmem:[%s1 + $0xc8] sm:$0xff] %vm843, %v804
  %870 = vst.msk [vmem:[%s1 + $0xd0] sm:$0xff] %vm843, %v805
  %871 = vst.msk [vmem:[%s1 + $0xd8] sm:$0xff] %vm843, %v806
  %872 = vst.msk [vmem:[%s1 + $0xe0] sm:$0xff] %vm843, %v807
  %873 = vst.msk [vmem:[%s1 + $0xe8] sm:$0xff] %vm843, %v808
  %874 = vst.msk [vmem:[%s1 + $0xf0] sm:$0xff] %vm843, %v809
  %875 = vst.msk [vmem:[%s1 + $0xf8] sm:$0xff] %vm843, %v810
  %876 = vst.msk [vmem:[%s1 + $0x100] sm:$0xff] %vm843, %v811
  %877 = vst.msk [vmem:[%s1 + $0x108] sm:$0xff] %vm843, %v812
  %878 = vst.msk [vmem:[%s1 + $0x110] sm:$0xff] %vm843, %v813
  %879 = vst.msk [vmem:[%s1 + $0x118] sm:$0xff] %vm843, %v814
  %880 = vst.msk [vmem:[%s1 + $0x120] sm:$0xff] %vm843, %v815
  %881 = vst.msk [vmem:[%s1 + $0x128] sm:$0xff] %vm843, %v816
  %882 = vst.msk [vmem:[%s1 + $0x130] sm:$0xff] %vm843, %v817
  %883 = vst.msk [vmem:[%s1 + $0x138] sm:$0xff] %vm843, %v818
  %884 = vst.msk [vmem:[%s1 + $0x140] sm:$0xff] %vm843, %v819
  %885 = vst.msk [vmem:[%s1 + $0x148] sm:$0xff] %vm843, %v820
  %886 = vst.msk [vmem:[%s1 + $0x150] sm:$0xff] %vm843, %v821
  %887 = vst.msk [vmem:[%s1 + $0x158] sm:$0xff] %vm843, %v822
  %888 = vst.msk [vmem:[%s1 + $0x160] sm:$0xff] %vm843, %v823
  %889 = vst.msk [vmem:[%s1 + $0x168] sm:$0xff] %vm843, %v824
  %890 = vst.msk [vmem:[%s1 + $0x170] sm:$0xff] %vm843, %v825
  %891 = vst.msk [vmem:[%s1 + $0x178] sm:$0xff] %vm843, %v826
  %892 = vst.msk [vmem:[%s1 + $0x180] sm:$0xff] %vm843, %v827
  %893 = vst.msk [vmem:[%s1 + $0x188] sm:$0xff] %vm843, %v828
  %894 = vst.msk [vmem:[%s1 + $0x190] sm:$0xff] %vm843, %v829
  %895 = vst.msk [vmem:[%s1 + $0x198] sm:$0xff] %vm843, %v830
  %896 = vst.msk [vmem:[%s1 + $0x1a0] sm:$0xff] %vm843, %v831
  %897 = vst.msk [vmem:[%s1 + $0x1a8] sm:$0xff] %vm843, %v832
  %898 = vst.msk [vmem:[%s1 + $0x1b0] sm:$0xff] %vm843, %v833
  %899 = vst.msk [vmem:[%s1 + $0x1b8] sm:$0xff] %vm843, %v834
  %900 = vst.msk [vmem:[%s1 + $0x1c0] sm:$0xff] %vm843, %v835
  %901 = vst.msk [vmem:[%s1 + $0x1c8] sm:$0xff] %vm843, %v836
  %902 = vst.msk [vmem:[%s1 + $0x1d0] sm:$0xff] %vm843, %v837
  %903 = vst.msk [vmem:[%s1 + $0x1d8] sm:$0xff] %vm843, %v838
  %904 = vst.msk [vmem:[%s1 + $0x1e0] sm:$0xff] %vm843, %v839
  %905 = vst.msk [vmem:[%s1 + $0x1e8] sm:$0xff] %vm843, %v840
  %906 = vst.msk [vmem:[%s1 + $0x1f0] sm:$0xff] %vm843, %v841
  %907 = vst.msk [vmem:[%s1 + $0x1f8] sm:$0xff] %vm843, %v842
  %v908 = vld [vmem:[%s0] sm:$0xff]
  %v909 = vld [vmem:[%s0 + $0x8] sm:$0xff]
  %v910 = vld [vmem:[%s0 + $0x10] sm:$0xff]
  %v911 = vld [vmem:[%s0 + $0x18] sm:$0xff]
  %v912 = vld [vmem:[%s0 + $0x20] sm:$0xff]
  %v913 = vld [vmem:[%s0 + $0x28] sm:$0xff]
  %v914 = vld [vmem:[%s0 + $0x30] sm:$0xff]
  %v915 = vld [vmem:[%s0 + $0x38] sm:$0xff]
  %v916 = vld [vmem:[%s0 + $0x40] sm:$0xff]
  %v917 = vld [vmem:[%s0 + $0x48] sm:$0xff]
  %v918 = vld [vmem:[%s0 + $0x50] sm:$0xff]
  %v919 = vld [vmem:[%s0 + $0x58] sm:$0xff]
  %v920 = vld [vmem:[%s0 + $0x60] sm:$0xff]
  %v921 = vld [vmem:[%s0 + $0x68] sm:$0xff]
  %v922 = vld [vmem:[%s0 + $0x70] sm:$0xff]
  %v923 = vld [vmem:[%s0 + $0x78] sm:$0xff]
  %v924 = vld [vmem:[%s0 + $0x80] sm:$0xff]
  %v925 = vld [vmem:[%s0 + $0x88] sm:$0xff]
  %v926 = vld [vmem:[%s0 + $0x90] sm:$0xff]
  %v927 = vld [vmem:[%s0 + $0x98] sm:$0xff]
  %v928 = vld [vmem:[%s0 + $0xa0] sm:$0xff]
  %v929 = vld [vmem:[%s0 + $0xa8] sm:$0xff]
  %v930 = vld [vmem:[%s0 + $0xb0] sm:$0xff]
  %v931 = vld [vmem:[%s0 + $0xb8] sm:$0xff]
  %v932 = vld [vmem:[%s0 + $0xc0] sm:$0xff]
  %v933 = vld [vmem:[%s0 + $0xc8] sm:$0xff]
  %v934 = vld [vmem:[%s0 + $0xd0] sm:$0xff]
  %v935 = vld [vmem:[%s0 + $0xd8] sm:$0xff]
  %v936 = vld [vmem:[%s0 + $0xe0] sm:$0xff]
  %v937 = vld [vmem:[%s0 + $0xe8] sm:$0xff]
  %v938 = vld [vmem:[%s0 + $0xf0] sm:$0xff]
  %v939 = vld [vmem:[%s0 + $0xf8] sm:$0xff]
  %v940 = vld [vmem:[%s0 + $0x100] sm:$0xff]
  %v941 = vld [vmem:[%s0 + $0x108] sm:$0xff]
  %v942 = vld [vmem:[%s0 + $0x110] sm:$0xff]
  %v943 = vld [vmem:[%s0 + $0x118] sm:$0xff]
  %v944 = vld [vmem:[%s0 + $0x120] sm:$0xff]
  %v945 = vld [vmem:[%s0 + $0x128] sm:$0xff]
  %v946 = vld [vmem:[%s0 + $0x130] sm:$0xff]
  %v947 = vld [vmem:[%s0 + $0x138] sm:$0xff]
  %v948 = vld [vmem:[%s0 + $0x140] sm:$0xff]
  %v949 = vld [vmem:[%s0 + $0x148] sm:$0xff]
  %v950 = vld [vmem:[%s0 + $0x150] sm:$0xff]
  %v951 = vld [vmem:[%s0 + $0x158] sm:$0xff]
  %v952 = vld [vmem:[%s0 + $0x160] sm:$0xff]
  %v953 = vld [vmem:[%s0 + $0x168] sm:$0xff]
  %v954 = vld [vmem:[%s0 + $0x170] sm:$0xff]
  %v955 = vld [vmem:[%s0 + $0x178] sm:$0xff]
  %v956 = vld [vmem:[%s0 + $0x180] sm:$0xff]
  %v957 = vld [vmem:[%s0 + $0x188] sm:$0xff]
  %v958 = vld [vmem:[%s0 + $0x190] sm:$0xff]
  %v959 = vld [vmem:[%s0 + $0x198] sm:$0xff]
  %v960 = vld [vmem:[%s0 + $0x1a0] sm:$0xff]
  %v961 = vld [vmem:[%s0 + $0x1a8] sm:$0xff]
  %v962 = vld [vmem:[%s0 + $0x1b0] sm:$0xff]
  %v963 = vld [vmem:[%s0 + $0x1b8] sm:$0xff]
  %v964 = vld [vmem:[%s0 + $0x1c0] sm:$0xff]
  %v965 = vld [vmem:[%s0 + $0x1c8] sm:$0xff]
  %v966 = vld [vmem:[%s0 + $0x1d0] sm:$0xff]
  %v967 = vld [vmem:[%s0 + $0x1d8] sm:$0xff]
  %v968 = vld [vmem:[%s0 + $0x1e0] sm:$0xff]
  %v969 = vld [vmem:[%s0 + $0x1e8] sm:$0xff]
  %v970 = vld [vmem:[%s0 + $0x1f0] sm:$0xff]
  %v971 = vld [vmem:[%s0 + $0x1f8] sm:$0xff]
  %973 = vset.pattern.permute.xlu0 4
  %974 = vperm.xlu0 %973, %v908
  %v975 = vpop.permute.xlu0 %974
  %978 = vset.pattern.permute.xlu0 4
  %979 = vperm.xlu0 %978, %v909
  %v980 = vpop.permute.xlu0 %979
  %983 = vset.pattern.permute.xlu0 4
  %984 = vperm.xlu0 %983, %v910
  %v985 = vpop.permute.xlu0 %984
  %988 = vset.pattern.permute.xlu0 4
  %989 = vperm.xlu0 %988, %v911
  %v990 = vpop.permute.xlu0 %989
  %993 = vset.pattern.permute.xlu0 4
  %994 = vperm.xlu0 %993, %v912
  %v995 = vpop.permute.xlu0 %994
  %998 = vset.pattern.permute.xlu0 4
  %999 = vperm.xlu0 %998, %v913
  %v1000 = vpop.permute.xlu0 %999
  %1003 = vset.pattern.permute.xlu0 4
  %1004 = vperm.xlu0 %1003, %v914
  %v1005 = vpop.permute.xlu0 %1004
  %1008 = vset.pattern.permute.xlu0 4
  %1009 = vperm.xlu0 %1008, %v915
  %v1010 = vpop.permute.xlu0 %1009
  %1013 = vset.pattern.permute.xlu0 4
  %1014 = vperm.xlu0 %1013, %v916
  %v1015 = vpop.permute.xlu0 %1014
  %1018 = vset.pattern.permute.xlu0 4
  %1019 = vperm.xlu0 %1018, %v917
  %v1020 = vpop.permute.xlu0 %1019
  %1023 = vset.pattern.permute.xlu0 4
  %1024 = vperm.xlu0 %1023, %v918
  %v1025 = vpop.permute.xlu0 %1024
  %1028 = vset.pattern.permute.xlu0 4
  %1029 = vperm.xlu0 %1028, %v919
  %v1030 = vpop.permute.xlu0 %1029
  %1033 = vset.pattern.permute.xlu0 4
  %1034 = vperm.xlu0 %1033, %v920
  %v1035 = vpop.permute.xlu0 %1034
  %1038 = vset.pattern.permute.xlu0 4
  %1039 = vperm.xlu0 %1038, %v921
  %v1040 = vpop.permute.xlu0 %1039
  %1043 = vset.pattern.permute.xlu0 4
  %1044 = vperm.xlu0 %1043, %v922
  %v1045 = vpop.permute.xlu0 %1044
  %1048 = vset.pattern.permute.xlu0 4
  %1049 = vperm.xlu0 %1048, %v923
  %v1050 = vpop.permute.xlu0 %1049
  %1053 = vset.pattern.permute.xlu0 4
  %1054 = vperm.xlu0 %1053, %v924
  %v1055 = vpop.permute.xlu0 %1054
  %1058 = vset.pattern.permute.xlu0 4
  %1059 = vperm.xlu0 %1058, %v925
  %v1060 = vpop.permute.xlu0 %1059
  %1063 = vset.pattern.permute.xlu0 4
  %1064 = vperm.xlu0 %1063, %v926
  %v1065 = vpop.permute.xlu0 %1064
  %1068 = vset.pattern.permute.xlu0 4
  %1069 = vperm.xlu0 %1068, %v927
  %v1070 = vpop.permute.xlu0 %1069
  %1073 = vset.pattern.permute.xlu0 4
  %1074 = vperm.xlu0 %1073, %v928
  %v1075 = vpop.permute.xlu0 %1074
  %1078 = vset.pattern.permute.xlu0 4
  %1079 = vperm.xlu0 %1078, %v929
  %v1080 = vpop.permute.xlu0 %1079
  %1083 = vset.pattern.permute.xlu0 4
  %1084 = vperm.xlu0 %1083, %v930
  %v1085 = vpop.permute.xlu0 %1084
  %1088 = vset.pattern.permute.xlu0 4
  %1089 = vperm.xlu0 %1088, %v931
  %v1090 = vpop.permute.xlu0 %1089
  %1093 = vset.pattern.permute.xlu0 4
  %1094 = vperm.xlu0 %1093, %v932
  %v1095 = vpop.permute.xlu0 %1094
  %1098 = vset.pattern.permute.xlu0 4
  %1099 = vperm.xlu0 %1098, %v933
  %v1100 = vpop.permute.xlu0 %1099
  %1103 = vset.pattern.permute.xlu0 4
  %1104 = vperm.xlu0 %1103, %v934
  %v1105 = vpop.permute.xlu0 %1104
  %1108 = vset.pattern.permute.xlu0 4
  %1109 = vperm.xlu0 %1108, %v935
  %v1110 = vpop.permute.xlu0 %1109
  %1113 = vset.pattern.permute.xlu0 4
  %1114 = vperm.xlu0 %1113, %v936
  %v1115 = vpop.permute.xlu0 %1114
  %1118 = vset.pattern.permute.xlu0 4
  %1119 = vperm.xlu0 %1118, %v937
  %v1120 = vpop.permute.xlu0 %1119
  %1123 = vset.pattern.permute.xlu0 4
  %1124 = vperm.xlu0 %1123, %v938
  %v1125 = vpop.permute.xlu0 %1124
  %1128 = vset.pattern.permute.xlu0 4
  %1129 = vperm.xlu0 %1128, %v939
  %v1130 = vpop.permute.xlu0 %1129
  %1133 = vset.pattern.permute.xlu0 4
  %1134 = vperm.xlu0 %1133, %v940
  %v1135 = vpop.permute.xlu0 %1134
  %1138 = vset.pattern.permute.xlu0 4
  %1139 = vperm.xlu0 %1138, %v941
  %v1140 = vpop.permute.xlu0 %1139
  %1143 = vset.pattern.permute.xlu0 4
  %1144 = vperm.xlu0 %1143, %v942
  %v1145 = vpop.permute.xlu0 %1144
  %1148 = vset.pattern.permute.xlu0 4
  %1149 = vperm.xlu0 %1148, %v943
  %v1150 = vpop.permute.xlu0 %1149
  %1153 = vset.pattern.permute.xlu0 4
  %1154 = vperm.xlu0 %1153, %v944
  %v1155 = vpop.permute.xlu0 %1154
  %1158 = vset.pattern.permute.xlu0 4
  %1159 = vperm.xlu0 %1158, %v945
  %v1160 = vpop.permute.xlu0 %1159
  %1163 = vset.pattern.permute.xlu0 4
  %1164 = vperm.xlu0 %1163, %v946
  %v1165 = vpop.permute.xlu0 %1164
  %1168 = vset.pattern.permute.xlu0 4
  %1169 = vperm.xlu0 %1168, %v947
  %v1170 = vpop.permute.xlu0 %1169
  %1173 = vset.pattern.permute.xlu0 4
  %1174 = vperm.xlu0 %1173, %v948
  %v1175 = vpop.permute.xlu0 %1174
  %1178 = vset.pattern.permute.xlu0 4
  %1179 = vperm.xlu0 %1178, %v949
  %v1180 = vpop.permute.xlu0 %1179
  %1183 = vset.pattern.permute.xlu0 4
  %1184 = vperm.xlu0 %1183, %v950
  %v1185 = vpop.permute.xlu0 %1184
  %1188 = vset.pattern.permute.xlu0 4
  %1189 = vperm.xlu0 %1188, %v951
  %v1190 = vpop.permute.xlu0 %1189
  %1193 = vset.pattern.permute.xlu0 4
  %1194 = vperm.xlu0 %1193, %v952
  %v1195 = vpop.permute.xlu0 %1194
  %1198 = vset.pattern.permute.xlu0 4
  %1199 = vperm.xlu0 %1198, %v953
  %v1200 = vpop.permute.xlu0 %1199
  %1203 = vset.pattern.permute.xlu0 4
  %1204 = vperm.xlu0 %1203, %v954
  %v1205 = vpop.permute.xlu0 %1204
  %1208 = vset.pattern.permute.xlu0 4
  %1209 = vperm.xlu0 %1208, %v955
  %v1210 = vpop.permute.xlu0 %1209
  %1213 = vset.pattern.permute.xlu0 4
  %1214 = vperm.xlu0 %1213, %v956
  %v1215 = vpop.permute.xlu0 %1214
  %1218 = vset.pattern.permute.xlu0 4
  %1219 = vperm.xlu0 %1218, %v957
  %v1220 = vpop.permute.xlu0 %1219
  %1223 = vset.pattern.permute.xlu0 4
  %1224 = vperm.xlu0 %1223, %v958
  %v1225 = vpop.permute.xlu0 %1224
  %1228 = vset.pattern.permute.xlu0 4
  %1229 = vperm.xlu0 %1228, %v959
  %v1230 = vpop.permute.xlu0 %1229
  %1233 = vset.pattern.permute.xlu0 4
  %1234 = vperm.xlu0 %1233, %v960
  %v1235 = vpop.permute.xlu0 %1234
  %1238 = vset.pattern.permute.xlu0 4
  %1239 = vperm.xlu0 %1238, %v961
  %v1240 = vpop.permute.xlu0 %1239
  %1243 = vset.pattern.permute.xlu0 4
  %1244 = vperm.xlu0 %1243, %v962
  %v1245 = vpop.permute.xlu0 %1244
  %1248 = vset.pattern.permute.xlu0 4
  %1249 = vperm.xlu0 %1248, %v963
  %v1250 = vpop.permute.xlu0 %1249
  %1253 = vset.pattern.permute.xlu0 4
  %1254 = vperm.xlu0 %1253, %v964
  %v1255 = vpop.permute.xlu0 %1254
  %1258 = vset.pattern.permute.xlu0 4
  %1259 = vperm.xlu0 %1258, %v965
  %v1260 = vpop.permute.xlu0 %1259
  %1263 = vset.pattern.permute.xlu0 4
  %1264 = vperm.xlu0 %1263, %v966
  %v1265 = vpop.permute.xlu0 %1264
  %1268 = vset.pattern.permute.xlu0 4
  %1269 = vperm.xlu0 %1268, %v967
  %v1270 = vpop.permute.xlu0 %1269
  %1273 = vset.pattern.permute.xlu0 4
  %1274 = vperm.xlu0 %1273, %v968
  %v1275 = vpop.permute.xlu0 %1274
  %1278 = vset.pattern.permute.xlu0 4
  %1279 = vperm.xlu0 %1278, %v969
  %v1280 = vpop.permute.xlu0 %1279
  %1283 = vset.pattern.permute.xlu0 4
  %1284 = vperm.xlu0 %1283, %v970
  %v1285 = vpop.permute.xlu0 %1284
  %1288 = vset.pattern.permute.xlu0 4
  %1289 = vperm.xlu0 %1288, %v971
  %v1290 = vpop.permute.xlu0 %1289
  %v1292 = vmul.f32 %v908, %v975
  %v1293 = vmul.f32 %v909, %v980
  %v1294 = vmul.f32 %v910, %v985
  %v1295 = vmul.f32 %v911, %v990
  %v1296 = vmul.f32 %v912, %v995
  %v1297 = vmul.f32 %v913, %v1000
  %v1298 = vmul.f32 %v914, %v1005
  %v1299 = vmul.f32 %v915, %v1010
  %v1300 = vmul.f32 %v916, %v1015
  %v1301 = vmul.f32 %v917, %v1020
  %v1302 = vmul.f32 %v918, %v1025
  %v1303 = vmul.f32 %v919, %v1030
  %v1304 = vmul.f32 %v920, %v1035
  %v1305 = vmul.f32 %v921, %v1040
  %v1306 = vmul.f32 %v922, %v1045
  %v1307 = vmul.f32 %v923, %v1050
  %v1308 = vmul.f32 %v924, %v1055
  %v1309 = vmul.f32 %v925, %v1060
  %v1310 = vmul.f32 %v926, %v1065
  %v1311 = vmul.f32 %v927, %v1070
  %v1312 = vmul.f32 %v928, %v1075
  %v1313 = vmul.f32 %v929, %v1080
  %v1314 = vmul.f32 %v930, %v1085
  %v1315 = vmul.f32 %v931, %v1090
  %v1316 = vmul.f32 %v932, %v1095
  %v1317 = vmul.f32 %v933, %v1100
  %v1318 = vmul.f32 %v934, %v1105
  %v1319 = vmul.f32 %v935, %v1110
  %v1320 = vmul.f32 %v936, %v1115
  %v1321 = vmul.f32 %v937, %v1120
  %v1322 = vmul.f32 %v938, %v1125
  %v1323 = vmul.f32 %v939, %v1130
  %v1324 = vmul.f32 %v940, %v1135
  %v1325 = vmul.f32 %v941, %v1140
  %v1326 = vmul.f32 %v942, %v1145
  %v1327 = vmul.f32 %v943, %v1150
  %v1328 = vmul.f32 %v944, %v1155
  %v1329 = vmul.f32 %v945, %v1160
  %v1330 = vmul.f32 %v946, %v1165
  %v1331 = vmul.f32 %v947, %v1170
  %v1332 = vmul.f32 %v948, %v1175
  %v1333 = vmul.f32 %v949, %v1180
  %v1334 = vmul.f32 %v950, %v1185
  %v1335 = vmul.f32 %v951, %v1190
  %v1336 = vmul.f32 %v952, %v1195
  %v1337 = vmul.f32 %v953, %v1200
  %v1338 = vmul.f32 %v954, %v1205
  %v1339 = vmul.f32 %v955, %v1210
  %v1340 = vmul.f32 %v956, %v1215
  %v1341 = vmul.f32 %v957, %v1220
  %v1342 = vmul.f32 %v958, %v1225
  %v1343 = vmul.f32 %v959, %v1230
  %v1344 = vmul.f32 %v960, %v1235
  %v1345 = vmul.f32 %v961, %v1240
  %v1346 = vmul.f32 %v962, %v1245
  %v1347 = vmul.f32 %v963, %v1250
  %v1348 = vmul.f32 %v964, %v1255
  %v1349 = vmul.f32 %v965, %v1260
  %v1350 = vmul.f32 %v966, %v1265
  %v1351 = vmul.f32 %v967, %v1270
  %v1352 = vmul.f32 %v968, %v1275
  %v1353 = vmul.f32 %v969, %v1280
  %v1354 = vmul.f32 %v970, %v1285
  %v1355 = vmul.f32 %v971, %v1290
  %1420 = vrot.lane.b32.xlu0 %v1292, 123
  %v1421 = vpop.permute.xlu0 %1420
  %1422 = vrot.lane.b32.xlu0 %v1293, 123
  %v1423 = vpop.permute.xlu0 %1422
  %1424 = vrot.lane.b32.xlu0 %v1294, 123
  %v1425 = vpop.permute.xlu0 %1424
  %1426 = vrot.lane.b32.xlu0 %v1295, 123
  %v1427 = vpop.permute.xlu0 %1426
  %1428 = vrot.lane.b32.xlu0 %v1296, 123
  %v1429 = vpop.permute.xlu0 %1428
  %1430 = vrot.lane.b32.xlu0 %v1297, 123
  %v1431 = vpop.permute.xlu0 %1430
  %1432 = vrot.lane.b32.xlu0 %v1298, 123
  %v1433 = vpop.permute.xlu0 %1432
  %1434 = vrot.lane.b32.xlu0 %v1299, 123
  %v1435 = vpop.permute.xlu0 %1434
  %1436 = vrot.lane.b32.xlu0 %v1300, 123
  %v1437 = vpop.permute.xlu0 %1436
  %1438 = vrot.lane.b32.xlu0 %v1301, 123
  %v1439 = vpop.permute.xlu0 %1438
  %1440 = vrot.lane.b32.xlu0 %v1302, 123
  %v1441 = vpop.permute.xlu0 %1440
  %1442 = vrot.lane.b32.xlu0 %v1303, 123
  %v1443 = vpop.permute.xlu0 %1442
  %1444 = vrot.lane.b32.xlu0 %v1304, 123
  %v1445 = vpop.permute.xlu0 %1444
  %1446 = vrot.lane.b32.xlu0 %v1305, 123
  %v1447 = vpop.permute.xlu0 %1446
  %1448 = vrot.lane.b32.xlu0 %v1306, 123
  %v1449 = vpop.permute.xlu0 %1448
  %1450 = vrot.lane.b32.xlu0 %v1307, 123
  %v1451 = vpop.permute.xlu0 %1450
  %1452 = vrot.lane.b32.xlu0 %v1308, 123
  %v1453 = vpop.permute.xlu0 %1452
  %1454 = vrot.lane.b32.xlu0 %v1309, 123
  %v1455 = vpop.permute.xlu0 %1454
  %1456 = vrot.lane.b32.xlu0 %v1310, 123
  %v1457 = vpop.permute.xlu0 %1456
  %1458 = vrot.lane.b32.xlu0 %v1311, 123
  %v1459 = vpop.permute.xlu0 %1458
  %1460 = vrot.lane.b32.xlu0 %v1312, 123
  %v1461 = vpop.permute.xlu0 %1460
  %1462 = vrot.lane.b32.xlu0 %v1313, 123
  %v1463 = vpop.permute.xlu0 %1462
  %1464 = vrot.lane.b32.xlu0 %v1314, 123
  %v1465 = vpop.permute.xlu0 %1464
  %1466 = vrot.lane.b32.xlu0 %v1315, 123
  %v1467 = vpop.permute.xlu0 %1466
  %1468 = vrot.lane.b32.xlu0 %v1316, 123
  %v1469 = vpop.permute.xlu0 %1468
  %1470 = vrot.lane.b32.xlu0 %v1317, 123
  %v1471 = vpop.permute.xlu0 %1470
  %1472 = vrot.lane.b32.xlu0 %v1318, 123
  %v1473 = vpop.permute.xlu0 %1472
  %1474 = vrot.lane.b32.xlu0 %v1319, 123
  %v1475 = vpop.permute.xlu0 %1474
  %1476 = vrot.lane.b32.xlu0 %v1320, 123
  %v1477 = vpop.permute.xlu0 %1476
  %1478 = vrot.lane.b32.xlu0 %v1321, 123
  %v1479 = vpop.permute.xlu0 %1478
  %1480 = vrot.lane.b32.xlu0 %v1322, 123
  %v1481 = vpop.permute.xlu0 %1480
  %1482 = vrot.lane.b32.xlu0 %v1323, 123
  %v1483 = vpop.permute.xlu0 %1482
  %1484 = vrot.lane.b32.xlu0 %v1324, 123
  %v1485 = vpop.permute.xlu0 %1484
  %1486 = vrot.lane.b32.xlu0 %v1325, 123
  %v1487 = vpop.permute.xlu0 %1486
  %1488 = vrot.lane.b32.xlu0 %v1326, 123
  %v1489 = vpop.permute.xlu0 %1488
  %1490 = vrot.lane.b32.xlu0 %v1327, 123
  %v1491 = vpop.permute.xlu0 %1490
  %1492 = vrot.lane.b32.xlu0 %v1328, 123
  %v1493 = vpop.permute.xlu0 %1492
  %1494 = vrot.lane.b32.xlu0 %v1329, 123
  %v1495 = vpop.permute.xlu0 %1494
  %1496 = vrot.lane.b32.xlu0 %v1330, 123
  %v1497 = vpop.permute.xlu0 %1496
  %1498 = vrot.lane.b32.xlu0 %v1331, 123
  %v1499 = vpop.permute.xlu0 %1498
  %1500 = vrot.lane.b32.xlu0 %v1332, 123
  %v1501 = vpop.permute.xlu0 %1500
  %1502 = vrot.lane.b32.xlu0 %v1333, 123
  %v1503 = vpop.permute.xlu0 %1502
  %1504 = vrot.lane.b32.xlu0 %v1334, 123
  %v1505 = vpop.permute.xlu0 %1504
  %1506 = vrot.lane.b32.xlu0 %v1335, 123
  %v1507 = vpop.permute.xlu0 %1506
  %1508 = vrot.lane.b32.xlu0 %v1336, 123
  %v1509 = vpop.permute.xlu0 %1508
  %1510 = vrot.lane.b32.xlu0 %v1337, 123
  %v1511 = vpop.permute.xlu0 %1510
  %1512 = vrot.lane.b32.xlu0 %v1338, 123
  %v1513 = vpop.permute.xlu0 %1512
  %1514 = vrot.lane.b32.xlu0 %v1339, 123
  %v1515 = vpop.permute.xlu0 %1514
  %1516 = vrot.lane.b32.xlu0 %v1340, 123
  %v1517 = vpop.permute.xlu0 %1516
  %1518 = vrot.lane.b32.xlu0 %v1341, 123
  %v1519 = vpop.permute.xlu0 %1518
  %1520 = vrot.lane.b32.xlu0 %v1342, 123
  %v1521 = vpop.permute.xlu0 %1520
  %1522 = vrot.lane.b32.xlu0 %v1343, 123
  %v1523 = vpop.permute.xlu0 %1522
  %1524 = vrot.lane.b32.xlu0 %v1344, 123
  %v1525 = vpop.permute.xlu0 %1524
  %1526 = vrot.lane.b32.xlu0 %v1345, 123
  %v1527 = vpop.permute.xlu0 %1526
  %1528 = vrot.lane.b32.xlu0 %v1346, 123
  %v1529 = vpop.permute.xlu0 %1528
  %1530 = vrot.lane.b32.xlu0 %v1347, 123
  %v1531 = vpop.permute.xlu0 %1530
  %1532 = vrot.lane.b32.xlu0 %v1348, 123
  %v1533 = vpop.permute.xlu0 %1532
  %1534 = vrot.lane.b32.xlu0 %v1349, 123
  %v1535 = vpop.permute.xlu0 %1534
  %1536 = vrot.lane.b32.xlu0 %v1350, 123
  %v1537 = vpop.permute.xlu0 %1536
  %1538 = vrot.lane.b32.xlu0 %v1351, 123
  %v1539 = vpop.permute.xlu0 %1538
  %1540 = vrot.lane.b32.xlu0 %v1352, 123
  %v1541 = vpop.permute.xlu0 %1540
  %1542 = vrot.lane.b32.xlu0 %v1353, 123
  %v1543 = vpop.permute.xlu0 %1542
  %1544 = vrot.lane.b32.xlu0 %v1354, 123
  %v1545 = vpop.permute.xlu0 %1544
  %1546 = vrot.lane.b32.xlu0 %v1355, 123
  %v1547 = vpop.permute.xlu0 %1546
  %vm1612 = vcmask 23552
  %1613 = vst.msk [vmem:[%s2] sm:$0xff] %vm1612, %v1421
  %1614 = vst.msk [vmem:[%s2 + $0x8] sm:$0xff] %vm1612, %v1423
  %1615 = vst.msk [vmem:[%s2 + $0x10] sm:$0xff] %vm1612, %v1425
  %1616 = vst.msk [vmem:[%s2 + $0x18] sm:$0xff] %vm1612, %v1427
  %1617 = vst.msk [vmem:[%s2 + $0x20] sm:$0xff] %vm1612, %v1429
  %1618 = vst.msk [vmem:[%s2 + $0x28] sm:$0xff] %vm1612, %v1431
  %1619 = vst.msk [vmem:[%s2 + $0x30] sm:$0xff] %vm1612, %v1433
  %1620 = vst.msk [vmem:[%s2 + $0x38] sm:$0xff] %vm1612, %v1435
  %1621 = vst.msk [vmem:[%s2 + $0x40] sm:$0xff] %vm1612, %v1437
  %1622 = vst.msk [vmem:[%s2 + $0x48] sm:$0xff] %vm1612, %v1439
  %1623 = vst.msk [vmem:[%s2 + $0x50] sm:$0xff] %vm1612, %v1441
  %1624 = vst.msk [vmem:[%s2 + $0x58] sm:$0xff] %vm1612, %v1443
  %1625 = vst.msk [vmem:[%s2 + $0x60] sm:$0xff] %vm1612, %v1445
  %1626 = vst.msk [vmem:[%s2 + $0x68] sm:$0xff] %vm1612, %v1447
  %1627 = vst.msk [vmem:[%s2 + $0x70] sm:$0xff] %vm1612, %v1449
  %1628 = vst.msk [vmem:[%s2 + $0x78] sm:$0xff] %vm1612, %v1451
  %1629 = vst.msk [vmem:[%s2 + $0x80] sm:$0xff] %vm1612, %v1453
  %1630 = vst.msk [vmem:[%s2 + $0x88] sm:$0xff] %vm1612, %v1455
  %1631 = vst.msk [vmem:[%s2 + $0x90] sm:$0xff] %vm1612, %v1457
  %1632 = vst.msk [vmem:[%s2 + $0x98] sm:$0xff] %vm1612, %v1459
  %1633 = vst.msk [vmem:[%s2 + $0xa0] sm:$0xff] %vm1612, %v1461
  %1634 = vst.msk [vmem:[%s2 + $0xa8] sm:$0xff] %vm1612, %v1463
  %1635 = vst.msk [vmem:[%s2 + $0xb0] sm:$0xff] %vm1612, %v1465
  %1636 = vst.msk [vmem:[%s2 + $0xb8] sm:$0xff] %vm1612, %v1467
  %1637 = vst.msk [vmem:[%s2 + $0xc0] sm:$0xff] %vm1612, %v1469
  %1638 = vst.msk [vmem:[%s2 + $0xc8] sm:$0xff] %vm1612, %v1471
  %1639 = vst.msk [vmem:[%s2 + $0xd0] sm:$0xff] %vm1612, %v1473
  %1640 = vst.msk [vmem:[%s2 + $0xd8] sm:$0xff] %vm1612, %v1475
  %1641 = vst.msk [vmem:[%s2 + $0xe0] sm:$0xff] %vm1612, %v1477
  %1642 = vst.msk [vmem:[%s2 + $0xe8] sm:$0xff] %vm1612, %v1479
  %1643 = vst.msk [vmem:[%s2 + $0xf0] sm:$0xff] %vm1612, %v1481
  %1644 = vst.msk [vmem:[%s2 + $0xf8] sm:$0xff] %vm1612, %v1483
  %1645 = vst.msk [vmem:[%s2 + $0x100] sm:$0xff] %vm1612, %v1485
  %1646 = vst.msk [vmem:[%s2 + $0x108] sm:$0xff] %vm1612, %v1487
  %1647 = vst.msk [vmem:[%s2 + $0x110] sm:$0xff] %vm1612, %v1489
  %1648 = vst.msk [vmem:[%s2 + $0x118] sm:$0xff] %vm1612, %v1491
  %1649 = vst.msk [vmem:[%s2 + $0x120] sm:$0xff] %vm1612, %v1493
  %1650 = vst.msk [vmem:[%s2 + $0x128] sm:$0xff] %vm1612, %v1495
  %1651 = vst.msk [vmem:[%s2 + $0x130] sm:$0xff] %vm1612, %v1497
  %1652 = vst.msk [vmem:[%s2 + $0x138] sm:$0xff] %vm1612, %v1499
  %1653 = vst.msk [vmem:[%s2 + $0x140] sm:$0xff] %vm1612, %v1501
  %1654 = vst.msk [vmem:[%s2 + $0x148] sm:$0xff] %vm1612, %v1503
  %1655 = vst.msk [vmem:[%s2 + $0x150] sm:$0xff] %vm1612, %v1505
  %1656 = vst.msk [vmem:[%s2 + $0x158] sm:$0xff] %vm1612, %v1507
  %1657 = vst.msk [vmem:[%s2 + $0x160] sm:$0xff] %vm1612, %v1509
  %1658 = vst.msk [vmem:[%s2 + $0x168] sm:$0xff] %vm1612, %v1511
  %1659 = vst.msk [vmem:[%s2 + $0x170] sm:$0xff] %vm1612, %v1513
  %1660 = vst.msk [vmem:[%s2 + $0x178] sm:$0xff] %vm1612, %v1515
  %1661 = vst.msk [vmem:[%s2 + $0x180] sm:$0xff] %vm1612, %v1517
  %1662 = vst.msk [vmem:[%s2 + $0x188] sm:$0xff] %vm1612, %v1519
  %1663 = vst.msk [vmem:[%s2 + $0x190] sm:$0xff] %vm1612, %v1521
  %1664 = vst.msk [vmem:[%s2 + $0x198] sm:$0xff] %vm1612, %v1523
  %1665 = vst.msk [vmem:[%s2 + $0x1a0] sm:$0xff] %vm1612, %v1525
  %1666 = vst.msk [vmem:[%s2 + $0x1a8] sm:$0xff] %vm1612, %v1527
  %1667 = vst.msk [vmem:[%s2 + $0x1b0] sm:$0xff] %vm1612, %v1529
  %1668 = vst.msk [vmem:[%s2 + $0x1b8] sm:$0xff] %vm1612, %v1531
  %1669 = vst.msk [vmem:[%s2 + $0x1c0] sm:$0xff] %vm1612, %v1533
  %1670 = vst.msk [vmem:[%s2 + $0x1c8] sm:$0xff] %vm1612, %v1535
  %1671 = vst.msk [vmem:[%s2 + $0x1d0] sm:$0xff] %vm1612, %v1537
  %1672 = vst.msk [vmem:[%s2 + $0x1d8] sm:$0xff] %vm1612, %v1539
  %1673 = vst.msk [vmem:[%s2 + $0x1e0] sm:$0xff] %vm1612, %v1541
  %1674 = vst.msk [vmem:[%s2 + $0x1e8] sm:$0xff] %vm1612, %v1543
  %1675 = vst.msk [vmem:[%s2 + $0x1f0] sm:$0xff] %vm1612, %v1545
  %1676 = vst.msk [vmem:[%s2 + $0x1f8] sm:$0xff] %vm1612, %v1547
  // Predicated region
  $region6: #{onnx_ort_forward.1} parent=0 // pred_check
    _
  $region7: #{onnx_ort_forward.1} parent=0 // pred_check_branch
    %1678 = sbr.rel (0) target = $region9
  $region8: #{onnx_ort_forward.1} parent=0 // pred_region
    _
  $region9: #{onnx_ort_forward.1} parent=0 // pred_fallthru
    _
  // Predicated region
  $region10: #{onnx_ort_forward.1} parent=0 // pred_check
    _
  $region11: #{onnx_ort_forward.1} parent=0 // pred_check_branch
    %1680 = sbr.rel (0) target = $region13
  $region12: #{onnx_ort_forward.1} parent=0 // pred_region
    _
  $region13: #{onnx_ort_forward.1} parent=0 // pred_fallthru
    _
  // Predicated region
  $region14: #{onnx_ort_forward.1} parent=0 // pred_check
    _
  $region15: #{onnx_ort_forward.1} parent=0 // pred_check_branch
    %1682 = sbr.rel (0) target = $region17
  $region16: #{onnx_ort_forward.1} parent=0 // pred_region
    _
  $region17: #{onnx_ort_forward.1} parent=0 // pred_fallthru
    _
  // Predicated region
  $region18: #{onnx_ort_forward.1} parent=0 // pred_check
    _
  $region19: #{onnx_ort_forward.1} parent=0 // pred_check_branch
    %1684 = sbr.rel (0) target = $region21
  $region20: #{onnx_ort_forward.1} parent=0 // pred_region
    _
  $region21: #{onnx_ort_forward.1} parent=0 // pred_fallthru
    _

</llo_original>
